<compile_context>
chip_gen: v6e
topology: v6e:2x2x1
jax: 0.10.0
libtpu: 0.0.40
codegen_flags: <defaults>
</compile_context>

<pallas_src>
import jax
import jax.numpy as jnp
from jax.experimental import pallas as pl
from jax.experimental.pallas import tpu as pltpu


def _round_up(x, m):
    return ((x + m - 1) // m) * m


def _pos_emb_kernel(x_ref, w1_ref, b1_ref, w2_ref, b2_ref, o_ref):
    # x_ref : (1, C_in, tn)    w1_ref: (C_hid, C_in)   b1_ref: (C_hid, 1)
    # w2_ref: (C_out, C_hid)   b2_ref: (C_out, 1)      o_ref : (1, C_out, tn)
    x = x_ref[0].astype(jnp.float32)              # (C_in, tn), lanes = tn
    w1 = w1_ref[...].astype(jnp.float32)          # (C_hid, C_in)
    c_in = x.shape[0]

    if c_in <= 8:
        # Tiny-K 1x1 conv on the VPU: unrolled broadcast FMAs
        # (C_hid,1) * (1,tn) -> (C_hid,tn); avoids a K=3 MXU pass.
        h = w1[:, 0:1] * x[0:1, :]
        for c in range(1, c_in):
            h = h + w1[:, c:c + 1] * x[c:c + 1, :]
    else:
        h = jnp.dot(w1, x, preferred_element_type=jnp.float32)

    h = h + b1_ref[...]                           # folded BN bias (C_hid, 1)
    h = jnp.maximum(h, 0.0)                       # ReLU

    # Second 1x1 conv on the MXU; result is already (C_out, tn) -> lane-dense store.
    y = jnp.dot(w2_ref[...].astype(jnp.float32), h,
                preferred_element_type=jnp.float32)
    y = y + b2_ref[...]                           # (C_out, 1)
    o_ref[0] = y.astype(o_ref.dtype)


def position_embedding_learned(xyz, params, *, tn=8192):
    """xyz: (B, N, C_in) float32. Returns (B, C_out, N) matching PyTorch output.

    params holds PyTorch-layout conv weights: w1 (C_hid, C_in), w2 (C_out, C_hid).
    """
    B, N, C_in = xyz.shape
    w1, b1, gamma, beta, run_mean, run_var, w2, b2 = params
    C_hid = w1.shape[0]
    C_out = w2.shape[0]
    eps = 1e-5

    # Fold BatchNorm (eval mode) into conv1.
    s = gamma / jnp.sqrt(run_var + eps)           # (C_hid,)
    w1f = (w1 * s[:, None]).astype(jnp.float32)   # (C_hid, C_in)
    b1f = ((b1 - run_mean) * s + beta).astype(jnp.float32)

    # NCL layout (same transpose the PyTorch module performs on its tiny input).
    # No spatial padding: the grid uses cdiv and the tail block is masked.
    x_ncl = jnp.transpose(xyz, (0, 2, 1)).astype(jnp.float32)   # (B, C_in, N)

    # --- spatial (lane) tile selection ---------------------------------------
    tn = max(128, min(tn, _round_up(N, 128)))     # lane tile, multiple of 128
    # v7x has 2 TensorCores: keep >= 2 grid blocks so both get work when B == 1.
    if B * pl.cdiv(N, tn) < 2 and N > 256:
        tn = _round_up(pl.cdiv(N, 2), 128)

    # VMEM estimate: double-buffered in/out tiles + f32 h intermediate + weights.
    def _vmem_est(t):
        tiles = 4 * t * (2 * (C_in + C_out) + C_hid)
        weights = 4 * (C_hid * C_in + C_out * C_hid + C_hid + C_out)
        return tiles + weights

    while tn > 512 and _vmem_est(tn) > (28 << 20):
        tn //= 2
    # Explicit scoped-VMEM limit: above default on v5e (16 MiB) when needed,
    # capped at v7x's 64 MiB physical per-TC.
    vmem_limit = min(max(int(_vmem_est(tn) * 1.5) + (4 << 20), 32 << 20), 64 << 20)

    grid = (B, pl.cdiv(N, tn))

    out = pl.pallas_call(
        _pos_emb_kernel,
        out_shape=jax.ShapeDtypeStruct((B, C_out, N), jnp.float32),
        grid_spec=pltpu.PrefetchScalarGridSpec(
            num_scalar_prefetch=0,
            grid=grid,
            in_specs=[
                pl.BlockSpec((1, C_in, tn), lambda b, i: (b, 0, i)),   # x (NCL)
                pl.BlockSpec((C_hid, C_in), lambda b, i: (0, 0)),      # W1 (BN folded)
                pl.BlockSpec((C_hid, 1), lambda b, i: (0, 0)),         # b1 (BN folded)
                pl.BlockSpec((C_out, C_hid), lambda b, i: (0, 0)),     # W2
                pl.BlockSpec((C_out, 1), lambda b, i: (0, 0)),         # b2
            ],
            out_specs=pl.BlockSpec((1, C_out, tn), lambda b, i: (b, 0, i)),
        ),
        compiler_params=pltpu.CompilerParams(
            dimension_semantics=("parallel", "parallel"),
            vmem_limit_bytes=vmem_limit),
    )(x_ncl, w1f, b1f.reshape(C_hid, 1), w2.astype(jnp.float32),
      b2.reshape(C_out, 1).astype(jnp.float32))

    return out


def make_params(key, c_in, c_hid, c_out):
    ks = jax.random.split(key, 8)
    # PyTorch Conv1d weight layout (out_ch, in_ch) for kernel_size=1.
    w1 = jax.random.normal(ks[0], (c_hid, c_in), jnp.float32) * 0.1
    b1 = jax.random.normal(ks[1], (c_hid,), jnp.float32) * 0.1
    gamma = 1.0 + 0.05 * jax.random.normal(ks[2], (c_hid,), jnp.float32)
    beta = 0.05 * jax.random.normal(ks[3], (c_hid,), jnp.float32)
    run_mean = 0.1 * jax.random.normal(ks[4], (c_hid,), jnp.float32)
    run_var = jnp.abs(1.0 + 0.1 * jax.random.normal(ks[5], (c_hid,), jnp.float32))
    w2 = jax.random.normal(ks[6], (c_out, c_hid), jnp.float32) * 0.1
    b2 = jax.random.normal(ks[7], (c_out,), jnp.float32) * 0.1
    return (w1, b1, gamma, beta, run_mean, run_var, w2, b2)


def reference_jax(xyz, params):
    w1, b1, gamma, beta, run_mean, run_var, w2, b2 = params
    eps = 1e-5
    h = jnp.einsum('bnc,hc->bnh', xyz, w1) + b1
    h = (h - run_mean) / jnp.sqrt(run_var + eps) * gamma + beta
    h = jnp.maximum(h, 0.0)
    y = jnp.einsum('bnh,oh->bno', h, w2) + b2
    return y.transpose(0, 2, 1)  # (B, C_out, N)


if __name__ == "__main__":
    key = jax.random.PRNGKey(0)
    k_x, k_p = jax.random.split(key)

    B, N, C_in = 2, 8, 3          # xyz points
    C_hid = C_out = 32            # num_pos_feats (small for the example)

    xyz = jax.random.normal(k_x, (B, N, C_in), jnp.float32)
    params = make_params(k_p, C_in, C_hid, C_out)

    out = position_embedding_learned(xyz, params)
    out = jax.block_until_ready(out)

    ref = reference_jax(xyz, params)
    assert out.shape == (B, C_out, N)
    assert jnp.allclose(out, ref, atol=1e-4, rtol=1e-4)

    print("KERNEL_OK")
</pallas_src>

<mosaic_0001>
module attributes {stable_mosaic.version = 11 : i64} {
  func.func @_pos_emb_kernel(%arg0: i32, %arg1: i32, %arg2: memref<1x3x128xf32, #tpu.memory_space<vmem>>, %arg3: memref<32x3xf32, #tpu.memory_space<vmem>>, %arg4: memref<32x1xf32, #tpu.memory_space<vmem>>, %arg5: memref<32x32xf32, #tpu.memory_space<vmem>>, %arg6: memref<32x1xf32, #tpu.memory_space<vmem>>, %arg7: memref<1x32x128xf32, #tpu.memory_space<vmem>>) attributes {dimension_semantics = [#tpu.dimension_semantics<parallel>, #tpu.dimension_semantics<parallel>], iteration_bounds = array<i64: 2, 1>, scalar_prefetch = 0 : i64, scratch_operands = 0 : i64, tpu.core_type = #tpu.core_type<tc>, window_params = [{transform_indices = @transform_0, window_bounds = array<i64: 1, 3, 128>}, {pipeline_mode = #tpu.pipeline_mode<synchronous>, transform_indices = @transform_1, window_bounds = array<i64: 32, 3>}, {pipeline_mode = #tpu.pipeline_mode<synchronous>, transform_indices = @transform_2, window_bounds = array<i64: 32, 1>}, {pipeline_mode = #tpu.pipeline_mode<synchronous>, transform_indices = @transform_3, window_bounds = array<i64: 32, 32>}, {pipeline_mode = #tpu.pipeline_mode<synchronous>, transform_indices = @transform_4, window_bounds = array<i64: 32, 1>}, {transform_indices = @transform_5, window_bounds = array<i64: 1, 32, 128>}]} {
    %c0 = arith.constant 0 : index
    %c0_0 = arith.constant 0 : index
    %c0_1 = arith.constant 0 : index
    %0 = vector.load %arg2[%c0, %c0_0, %c0_1] : memref<1x3x128xf32, #tpu.memory_space<vmem>>, vector<1x3x128xf32>
    %1 = vector.shape_cast %0 : vector<1x3x128xf32> to vector<3x128xf32>
    %c0_2 = arith.constant 0 : index
    %c0_3 = arith.constant 0 : index
    %2 = vector.load %arg3[%c0_2, %c0_3] : memref<32x3xf32, #tpu.memory_space<vmem>>, vector<32x3xf32>
    %3 = vector.extract_strided_slice %2 {offsets = [0, 0], sizes = [32, 1], strides = [1, 1]} : vector<32x3xf32> to vector<32x1xf32>
    %4 = vector.extract_strided_slice %1 {offsets = [0, 0], sizes = [1, 128], strides = [1, 1]} : vector<3x128xf32> to vector<1x128xf32>
    %5 = vector.broadcast %3 : vector<32x1xf32> to vector<32x128xf32>
    %6 = vector.broadcast %4 : vector<1x128xf32> to vector<32x128xf32>
    %7 = arith.mulf %5, %6 : vector<32x128xf32>
    %8 = vector.extract_strided_slice %2 {offsets = [0, 1], sizes = [32, 1], strides = [1, 1]} : vector<32x3xf32> to vector<32x1xf32>
    %9 = vector.extract_strided_slice %1 {offsets = [1, 0], sizes = [1, 128], strides = [1, 1]} : vector<3x128xf32> to vector<1x128xf32>
    %10 = vector.broadcast %8 : vector<32x1xf32> to vector<32x128xf32>
    %11 = vector.broadcast %9 : vector<1x128xf32> to vector<32x128xf32>
    %12 = arith.mulf %10, %11 : vector<32x128xf32>
    %13 = arith.addf %7, %12 : vector<32x128xf32>
    %14 = vector.extract_strided_slice %2 {offsets = [0, 2], sizes = [32, 1], strides = [1, 1]} : vector<32x3xf32> to vector<32x1xf32>
    %15 = vector.extract_strided_slice %1 {offsets = [2, 0], sizes = [1, 128], strides = [1, 1]} : vector<3x128xf32> to vector<1x128xf32>
    %16 = vector.broadcast %14 : vector<32x1xf32> to vector<32x128xf32>
    %17 = vector.broadcast %15 : vector<1x128xf32> to vector<32x128xf32>
    %18 = arith.mulf %16, %17 : vector<32x128xf32>
    %19 = arith.addf %13, %18 : vector<32x128xf32>
    %c0_4 = arith.constant 0 : index
    %c0_5 = arith.constant 0 : index
    %20 = vector.load %arg4[%c0_4, %c0_5] : memref<32x1xf32, #tpu.memory_space<vmem>>, vector<32x1xf32>
    %21 = vector.broadcast %20 : vector<32x1xf32> to vector<32x128xf32>
    %22 = arith.addf %19, %21 : vector<32x128xf32>
    %cst = arith.constant 0.000000e+00 : f32
    %23 = vector.broadcast %cst : f32 to vector<32x128xf32>
    %24 = arith.maximumf %22, %23 : vector<32x128xf32>
    %c0_6 = arith.constant 0 : index
    %c0_7 = arith.constant 0 : index
    %25 = vector.load %arg5[%c0_6, %c0_7] : memref<32x32xf32, #tpu.memory_space<vmem>>, vector<32x32xf32>
    %cst_8 = arith.constant dense<0.000000e+00> : vector<32x128xf32>
    %26 = tpu.matmul %25, %24, %cst_8 {dimension_numbers = #tpu.dot_dimension_numbers<[1], [0], [0], [1], [0, 0, 1, 1], [], []>} : vector<32x32xf32>, vector<32x128xf32>, vector<32x128xf32> -> vector<32x128xf32>
    %c0_9 = arith.constant 0 : index
    %c0_10 = arith.constant 0 : index
    %27 = vector.load %arg6[%c0_9, %c0_10] : memref<32x1xf32, #tpu.memory_space<vmem>>, vector<32x1xf32>
    %28 = vector.broadcast %27 : vector<32x1xf32> to vector<32x128xf32>
    %29 = arith.addf %26, %28 : vector<32x128xf32>
    %c0_11 = arith.constant 0 : index
    %c0_12 = arith.constant 0 : index
    %c0_13 = arith.constant 0 : index
    %30 = vector.load %arg7[%c0_11, %c0_12, %c0_13] : memref<1x32x128xf32, #tpu.memory_space<vmem>>, vector<1x32x128xf32>
    %31 = vector.shape_cast %30 : vector<1x32x128xf32> to vector<32x128xf32>
    %32 = vector.shape_cast %29 : vector<32x128xf32> to vector<1x32x128xf32>
    tpu.vector_store %arg7[%c0_11, %c0_12, %c0_13], %32 {strides = array<i32>} : memref<1x32x128xf32, #tpu.memory_space<vmem>>, vector<1x32x128xf32>,
    return
  }
  func.func @transform_0(%arg0: i32, %arg1: i32) -> (i32, i32, i32) {
    %c0_i32 = arith.constant 0 : i32
    %c0_i32_0 = arith.constant 0 : i32
    return %arg0, %c0_i32, %arg1 : i32, i32, i32
  }
  func.func @transform_1(%arg0: i32, %arg1: i32) -> (i32, i32) {
    %c0_i32 = arith.constant 0 : i32
    %c0_i32_0 = arith.constant 0 : i32
    %c0_i32_1 = arith.constant 0 : i32
    return %c0_i32, %c0_i32_0 : i32, i32
  }
  func.func @transform_2(%arg0: i32, %arg1: i32) -> (i32, i32) {
    %c0_i32 = arith.constant 0 : i32
    %c0_i32_0 = arith.constant 0 : i32
    %c0_i32_1 = arith.constant 0 : i32
    return %c0_i32, %c0_i32_0 : i32, i32
  }
  func.func @transform_3(%arg0: i32, %arg1: i32) -> (i32, i32) {
    %c0_i32 = arith.constant 0 : i32
    %c0_i32_0 = arith.constant 0 : i32
    %c0_i32_1 = arith.constant 0 : i32
    return %c0_i32, %c0_i32_0 : i32, i32
  }
  func.func @transform_4(%arg0: i32, %arg1: i32) -> (i32, i32) {
    %c0_i32 = arith.constant 0 : i32
    %c0_i32_0 = arith.constant 0 : i32
    %c0_i32_1 = arith.constant 0 : i32
    return %c0_i32, %c0_i32_0 : i32, i32
  }
  func.func @transform_5(%arg0: i32, %arg1: i32) -> (i32, i32, i32) {
    %c0_i32 = arith.constant 0 : i32
    %c0_i32_0 = arith.constant 0 : i32
    return %arg0, %c0_i32, %arg1 : i32, i32, i32
  }
}

</mosaic_0001>

<llo_original>
// kernel: tpu_custom_call.1
$region0: #{tpu_custom_call.1}
  #allocation0 [shape = 'u32[]', space=smem, size = 0x4, offset = 0x4, fixed_abs, tag = 'smem constant byte address 0x4 - core index']
  #allocation1 [shape = 'u32[144,128]{1,0:T(1,128)}', space=vmem, size = 0x12000, scoped, tag = 'internal scratch']
  %s0 = inlined_call_operand.vmem [shape: f32[2,3,8], index: 0, kind: input, shape index: {}]
  %s1 = inlined_call_operand.vmem [shape: f32[32,3], index: 1, kind: input, shape index: {}]
  %s2 = inlined_call_operand.vmem [shape: f32[32,1], index: 2, kind: input, shape index: {}]
  %s3 = inlined_call_operand.vmem [shape: f32[32,32], index: 3, kind: input, shape index: {}]
  %s4 = inlined_call_operand.vmem [shape: f32[32,1], index: 4, kind: input, shape index: {}]
  %s5 = inlined_call_operand.vmem [shape: f32[2,32,8], index: 5, kind: output, shape index: {}]
  %s6 = sld [smem:[#allocation0]]
  $region53: #{tpu_custom_call.1} parent=0
    _
  %s8 = ssub.s32 1, %s6
  %s9 = scalar_select 0, %s8, %s6
  loop: start=0, step=1, limit=4
  $region2: #{tpu_custom_call.1} parent=0 // loop_pre_header
    _
  $region3: #{tpu_custom_call.1} parent=0 // loop_header
    %s11 = sphi 0, %s15
    %p12 = scmp.ge.s32.totalorder %s11, 4
    %s18 = sphi 0, %s30
    %s19 = sphi 0, %s26
    %s20 = sphi 0, %s18
    %s21 = sphi 0, %s19
    %s22 = sphi 0, %s20
    %s23 = sphi 0, %s21
    %s35 = sphi 0, %s37
    %s38 = sphi 0, %s35
    %s39 = sphi 0, %s38
    %s55 = sphi 0, %s39
    %s59 = sphi 0, %s59
    %s61 = sphi 0, %s59
    %s62 = sphi 0, %s61
    %s76 = sphi 0, %s62
    %s80 = sphi 0, %s80
    %s82 = sphi 0, %s80
    %s83 = sphi 0, %s82
    %s97 = sphi 0, %s83
    %s101 = sphi 0, %s101
    %s103 = sphi 0, %s101
    %s104 = sphi 0, %s103
    %s118 = sphi 0, %s104
    %s122 = sphi 0, %s122
    %s124 = sphi 0, %s122
    %s125 = sphi 0, %s124
    %s139 = sphi 0, %s125
    %s147 = sphi 0, %s149
    %s150 = sphi 0, %s147
    %s151 = sphi 0, %s150
    %s167 = sphi 0, %s151
  $region4: #{tpu_custom_call.1} parent=0 // loop_header_branch
    %14 = sbr.rel (%p12) target = $region8
  $region5: #{tpu_custom_call.1} parent=0 // loop_body
    %s16 = ssub.s32 %s11, 1
    %s17 = ssub.s32 %s11, 2
    %s24 = sadd.s32 1, %s19
    %p25 = scmp.ge.s32.totalorder %s24, 1
    %s26 = scalar_select %p25, 0, %s24
    %s27 = sadd.s32 1, %s18
    %s28 = scalar_select %p25, %s27, %s18
    %p29 = scmp.ge.s32.totalorder %s28, 2
    %s30 = scalar_select %p29, 0, %s28
    %s31 = ssub.s32 %s18, %s30
    %s32 = ssub.s32 %s19, %s26
    %s33 = sor.u32 %s31, %s32
    %p34 = scmp.eq.s32.totalorder %s33, 0
    %s36 = sadd.s32 %s35, 1
    %s37 = scalar_select %p34, %s35, %s36
    %p40 = pneg %p34
    %p41 = scmp.eq.s32.totalorder %s11, 1
    %p42 = por %p40, %p41
    %p43 = scmp.ne.s32.totalorder %s35, %s38
    %p44 = scmp.eq.s32.totalorder %s11, 0
    %p45 = por %p43, %p44
    %p46 = scmp.ne.s32.totalorder %s35, %s38
    %p47 = scmp.eq.s32.totalorder %s16, 1
    %p48 = por %p46, %p47
    %p49 = scmp.ne.s32.totalorder %s38, %s39
    %p50 = scmp.eq.s32.totalorder %s16, 0
    %p51 = por %p49, %p50
    %p52 = scmp.ne.s32.totalorder %s38, %s39
    %p53 = scmp.eq.s32.totalorder %s17, 1
    %p54 = por %p52, %p53
    %p56 = scmp.ne.s32.totalorder %s39, %s55
    %p57 = scmp.eq.s32.totalorder %s17, 0
    %p58 = por %p56, %p57
    %s60 = sadd.s32 %s59, 1
    %p63 = scmp.eq.s32.totalorder %s11, 1
    %p64 = scmp.ne.s32.totalorder %s59, %s61
    %p65 = scmp.eq.s32.totalorder %s11, 0
    %p66 = por %p64, %p65
    %p67 = scmp.ne.s32.totalorder %s59, %s61
    %p68 = scmp.eq.s32.totalorder %s16, 1
    %p69 = por %p67, %p68
    %p70 = scmp.ne.s32.totalorder %s61, %s62
    %p71 = scmp.eq.s32.totalorder %s16, 0
    %p72 = por %p70, %p71
    %p73 = scmp.ne.s32.totalorder %s61, %s62
    %p74 = scmp.eq.s32.totalorder %s17, 1
    %p75 = por %p73, %p74
    %p77 = scmp.ne.s32.totalorder %s62, %s76
    %p78 = scmp.eq.s32.totalorder %s17, 0
    %p79 = por %p77, %p78
    %s81 = sadd.s32 %s80, 1
    %p84 = scmp.eq.s32.totalorder %s11, 1
    %p85 = scmp.ne.s32.totalorder %s80, %s82
    %p86 = scmp.eq.s32.totalorder %s11, 0
    %p87 = por %p85, %p86
    %p88 = scmp.ne.s32.totalorder %s80, %s82
    %p89 = scmp.eq.s32.totalorder %s16, 1
    %p90 = por %p88, %p89
    %p91 = scmp.ne.s32.totalorder %s82, %s83
    %p92 = scmp.eq.s32.totalorder %s16, 0
    %p93 = por %p91, %p92
    %p94 = scmp.ne.s32.totalorder %s82, %s83
    %p95 = scmp.eq.s32.totalorder %s17, 1
    %p96 = por %p94, %p95
    %p98 = scmp.ne.s32.totalorder %s83, %s97
    %p99 = scmp.eq.s32.totalorder %s17, 0
    %p100 = por %p98, %p99
    %s102 = sadd.s32 %s101, 1
    %p105 = scmp.eq.s32.totalorder %s11, 1
    %p106 = scmp.ne.s32.totalorder %s101, %s103
    %p107 = scmp.eq.s32.totalorder %s11, 0
    %p108 = por %p106, %p107
    %p109 = scmp.ne.s32.totalorder %s101, %s103
    %p110 = scmp.eq.s32.totalorder %s16, 1
    %p111 = por %p109, %p110
    %p112 = scmp.ne.s32.totalorder %s103, %s104
    %p113 = scmp.eq.s32.totalorder %s16, 0
    %p114 = por %p112, %p113
    %p115 = scmp.ne.s32.totalorder %s103, %s104
    %p116 = scmp.eq.s32.totalorder %s17, 1
    %p117 = por %p115, %p116
    %p119 = scmp.ne.s32.totalorder %s104, %s118
    %p120 = scmp.eq.s32.totalorder %s17, 0
    %p121 = por %p119, %p120
    %s123 = sadd.s32 %s122, 1
    %p126 = scmp.eq.s32.totalorder %s11, 1
    %p127 = scmp.ne.s32.totalorder %s122, %s124
    %p128 = scmp.eq.s32.totalorder %s11, 0
    %p129 = por %p127, %p128
    %p130 = scmp.ne.s32.totalorder %s122, %s124
    %p131 = scmp.eq.s32.totalorder %s16, 1
    %p132 = por %p130, %p131
    %p133 = scmp.ne.s32.totalorder %s124, %s125
    %p134 = scmp.eq.s32.totalorder %s16, 0
    %p135 = por %p133, %p134
    %p136 = scmp.ne.s32.totalorder %s124, %s125
    %p137 = scmp.eq.s32.totalorder %s17, 1
    %p138 = por %p136, %p137
    %p140 = scmp.ne.s32.totalorder %s125, %s139
    %p141 = scmp.eq.s32.totalorder %s17, 0
    %p142 = por %p140, %p141
    %s143 = ssub.s32 %s18, %s30
    %s144 = ssub.s32 %s19, %s26
    %s145 = sor.u32 %s143, %s144
    %p146 = scmp.eq.s32.totalorder %s145, 0
    %s148 = sadd.s32 %s147, 1
    %s149 = scalar_select %p146, %s147, %s148
    %p152 = pneg %p146
    %p153 = scmp.eq.s32.totalorder %s11, 1
    %p154 = por %p152, %p153
    %p155 = scmp.ne.s32.totalorder %s147, %s150
    %p156 = scmp.eq.s32.totalorder %s11, 0
    %p157 = por %p155, %p156
    %p158 = scmp.ne.s32.totalorder %s147, %s150
    %p159 = scmp.eq.s32.totalorder %s16, 1
    %p160 = por %p158, %p159
    %p161 = scmp.ne.s32.totalorder %s150, %s151
    %p162 = scmp.eq.s32.totalorder %s16, 0
    %p163 = por %p161, %p162
    %p164 = scmp.ne.s32.totalorder %s150, %s151
    %p165 = scmp.eq.s32.totalorder %s17, 1
    %p166 = por %p164, %p165
    %p168 = scmp.ne.s32.totalorder %s151, %s167
    %p169 = scmp.eq.s32.totalorder %s17, 0
    %p170 = por %p168, %p169
    %p171 = scmp.le.s32.totalorder 1, %s11
    %p172 = scmp.lt.s32.totalorder %s11, 3
    %p173 = pnand %p171, %p172
    %p174 = pneg %p173
    // Predicated region
    $region9: #{tpu_custom_call.1} parent=5 // pred_check
      _
    $region10: #{tpu_custom_call.1} parent=5 // pred_check_branch
      %176 = sbr.rel (%p173) target = $region12
    $region11: #{tpu_custom_call.1} parent=5 // pred_region
      %s177 = ssub.s32 %s11, 1
      // Predicated region
      $region13: #{tpu_custom_call.1} parent=11 // pred_check
        %p178 = pneg %p72
      $region14: #{tpu_custom_call.1} parent=11 // pred_check_branch
        %180 = sbr.rel (%p178) target = $region16
      $region15: #{tpu_custom_call.1} parent=11 // pred_region
        _
      $region16: #{tpu_custom_call.1} parent=11 // pred_fallthru
        _
      // Predicated region
      $region17: #{tpu_custom_call.1} parent=11 // pred_check
        %p181 = pneg %p93
      $region18: #{tpu_custom_call.1} parent=11 // pred_check_branch
        %183 = sbr.rel (%p181) target = $region20
      $region19: #{tpu_custom_call.1} parent=11 // pred_region
        _
      $region20: #{tpu_custom_call.1} parent=11 // pred_fallthru
        _
      // Predicated region
      $region21: #{tpu_custom_call.1} parent=11 // pred_check
        %p184 = pneg %p114
      $region22: #{tpu_custom_call.1} parent=11 // pred_check_branch
        %186 = sbr.rel (%p184) target = $region24
      $region23: #{tpu_custom_call.1} parent=11 // pred_region
        _
      $region24: #{tpu_custom_call.1} parent=11 // pred_fallthru
        _
      // Predicated region
      $region25: #{tpu_custom_call.1} parent=11 // pred_check
        %p187 = pneg %p135
      $region26: #{tpu_custom_call.1} parent=11 // pred_check_branch
        %189 = sbr.rel (%p187) target = $region28
      $region27: #{tpu_custom_call.1} parent=11 // pred_region
        _
      $region28: #{tpu_custom_call.1} parent=11 // pred_fallthru
        _
    $region12: #{tpu_custom_call.1} parent=5 // pred_fallthru
      _
    %p190 = scmp.lt.s32.totalorder %s11, 2
    // Predicated region
    $region29: #{tpu_custom_call.1} parent=5 // pred_check
      %p191 = pneg %p190
    $region30: #{tpu_custom_call.1} parent=5 // pred_check_branch
      %193 = sbr.rel (%p191) target = $region32
    $region31: #{tpu_custom_call.1} parent=5 // pred_region
      // Predicated region
      $region33: #{tpu_custom_call.1} parent=31 // pred_check
        %p194 = pneg %p45
      $region34: #{tpu_custom_call.1} parent=31 // pred_check_branch
        %196 = sbr.rel (%p194) target = $region36
      $region35: #{tpu_custom_call.1} parent=31 // pred_region
        %p197 = scmp.lt.s32.totalorder %s18, 1
        %s198 = scalar_select %p197, %s18, 1
        %p199 = scmp.lt.s32.totalorder %s19, 0
        %s200 = scalar_select %p199, %s19, 0
        %s201 = sadd.s32 %s200, %s198
        %s202 = smul.addr %s201, 4
        %s203 = scalar_lea.vmem %s0, %s202
      $region36: #{tpu_custom_call.1} parent=31 // pred_fallthru
        _
    $region32: #{tpu_custom_call.1} parent=5 // pred_fallthru
      _
    %p204 = scmp.le.s32.totalorder 1, %s11
    %p205 = scmp.lt.s32.totalorder %s11, 3
    %p206 = pnand %p204, %p205
    %p207 = pneg %p206
    // Predicated region
    $region37: #{tpu_custom_call.1} parent=5 // pred_check
      _
    $region38: #{tpu_custom_call.1} parent=5 // pred_check_branch
      %209 = sbr.rel (%p206) target = $region40
    $region39: #{tpu_custom_call.1} parent=5 // pred_region
      %s210 = ssub.s32 %s11, 1
      %p211 = scmp.lt.s32.totalorder %s20, 1
      %s212 = scalar_select %p211, %s20, 1
      %p213 = scmp.lt.s32.totalorder %s21, 0
      %s214 = scalar_select %p213, %s21, 0
      %s215 = sadd.s32 %s214, %s212
      %s216 = smul.addr %s215, 4
      %s217 = scalar_lea.vmem %s0, %s216
      %p218 = pneg %p51
      %p219 = pneg %p48
      %p220 = pneg %p72
      %p221 = pneg %p69
      %p222 = pneg %p93
      %p223 = pneg %p90
      %p224 = pneg %p114
      %p225 = pneg %p111
      %p226 = pneg %p135
      %p227 = pneg %p132
      %p228 = pneg %p163
      %p229 = pneg %p160
      %p230 = scmp.lt.s32.totalorder %s20, 1
      %s231 = scalar_select %p230, %s20, 1
      %p232 = scmp.lt.s32.totalorder %s21, 0
      %s233 = scalar_select %p232, %s21, 0
      %s234 = smul.addr %s231, 4
      %s235 = sadd.s32 %s233, %s234
      %s236 = smul.addr %s235, 8
      %s237 = scalar_lea.vmem %s5, %s236
      %p238 = scmp.lt.s32.totalorder %s20, 1
      %s239 = scalar_select %p238, %s20, 1
      %p240 = scmp.lt.s32.totalorder %s21, 0
      %s241 = scalar_select %p240, %s21, 0
      %s242 = sadd.s32 %s241, %s239
      %s243 = smul.addr %s242, 4
      %s244 = scalar_lea.vmem %s0, %s243
      %p245 = scmp.lt.s32.totalorder %s20, 1
      %s246 = scalar_select %p245, %s20, 1
      %p247 = scmp.lt.s32.totalorder %s21, 0
      %s248 = scalar_select %p247, %s21, 0
      %s249 = smul.addr %s246, 4
      %s250 = sadd.s32 %s248, %s249
      %s251 = smul.addr %s250, 8
      %s252 = scalar_lea.vmem %s5, %s251
      %v253 = vld [vmem:[%s244] sm:$0x7]
      %v254 = vld [vmem:[%s1] sm:$0xff]
      %v255 = vld [vmem:[%s1 + $0x8] sm:$0xff]
      %v256 = vld [vmem:[%s1 + $0x10] sm:$0xff]
      %v257 = vld [vmem:[%s1 + $0x18] sm:$0xff]
      %259 = vset.pattern.permute.xlu0 0
      %260 = vperm.xlu0 %259, %v254
      %v261 = vpop.permute.xlu0 %260
      %264 = vset.pattern.permute.xlu0 0
      %265 = vperm.xlu0 %264, %v255
      %v266 = vpop.permute.xlu0 %265
      %269 = vset.pattern.permute.xlu0 0
      %270 = vperm.xlu0 %269, %v256
      %v271 = vpop.permute.xlu0 %270
      %274 = vset.pattern.permute.xlu0 0
      %275 = vperm.xlu0 %274, %v257
      %v276 = vpop.permute.xlu0 %275
      %v278 = vlaneseq
      %v279 = vshrl.u32 %v278, 7
      %v280 = vsub.s32 0, %v279
      %v281 = vrot.slane %v253, %v280
      %v282 = vmul.f32 %v261, %v281
      %v283 = vmul.f32 %v266, %v281
      %v284 = vmul.f32 %v271, %v281
      %v285 = vmul.f32 %v276, %v281
      %286 = vset.pattern.permute.xlu0 1
      %287 = vperm.xlu0 %286, %v254
      %v288 = vpop.permute.xlu0 %287
      %290 = vset.pattern.permute.xlu0 1
      %291 = vperm.xlu0 %290, %v255
      %v292 = vpop.permute.xlu0 %291
      %294 = vset.pattern.permute.xlu0 1
      %295 = vperm.xlu0 %294, %v256
      %v296 = vpop.permute.xlu0 %295
      %298 = vset.pattern.permute.xlu0 1
      %299 = vperm.xlu0 %298, %v257
      %v300 = vpop.permute.xlu0 %299
      %v302 = vlaneseq
      %v303 = vshrl.u32 %v302, 7
      %v304 = vsub.s32 1, %v303
      %v305 = vrot.slane %v253, %v304
      %v306 = vmul.f32 %v288, %v305
      %v307 = vmul.f32 %v292, %v305
      %v308 = vmul.f32 %v296, %v305
      %v309 = vmul.f32 %v300, %v305
      %v310 = vadd.f32 %v282, %v306
      %v311 = vadd.f32 %v283, %v307
      %v312 = vadd.f32 %v284, %v308
      %v313 = vadd.f32 %v285, %v309
      %314 = vset.pattern.permute.xlu0 2
      %315 = vperm.xlu0 %314, %v254
      %v316 = vpop.permute.xlu0 %315
      %318 = vset.pattern.permute.xlu0 2
      %319 = vperm.xlu0 %318, %v255
      %v320 = vpop.permute.xlu0 %319
      %322 = vset.pattern.permute.xlu0 2
      %323 = vperm.xlu0 %322, %v256
      %v324 = vpop.permute.xlu0 %323
      %326 = vset.pattern.permute.xlu0 2
      %327 = vperm.xlu0 %326, %v257
      %v328 = vpop.permute.xlu0 %327
      %v330 = vlaneseq
      %v331 = vshrl.u32 %v330, 7
      %v332 = vsub.s32 2, %v331
      %v333 = vrot.slane %v253, %v332
      %v334 = vmul.f32 %v316, %v333
      %v335 = vmul.f32 %v320, %v333
      %v336 = vmul.f32 %v324, %v333
      %v337 = vmul.f32 %v328, %v333
      %v338 = vadd.f32 %v310, %v334
      %v339 = vadd.f32 %v311, %v335
      %v340 = vadd.f32 %v312, %v336
      %v341 = vadd.f32 %v313, %v337
      %v342 = vld [vmem:[%s2] sm:$0xff]
      %v343 = vld [vmem:[%s2 + $0x8] sm:$0xff]
      %v344 = vld [vmem:[%s2 + $0x10] sm:$0xff]
      %v345 = vld [vmem:[%s2 + $0x18] sm:$0xff]
      %347 = vset.pattern.permute.xlu0 0
      %348 = vperm.xlu0 %347, %v342
      %v349 = vpop.permute.xlu0 %348
      %352 = vset.pattern.permute.xlu0 0
      %353 = vperm.xlu0 %352, %v343
      %v354 = vpop.permute.xlu0 %353
      %357 = vset.pattern.permute.xlu0 0
      %358 = vperm.xlu0 %357, %v344
      %v359 = vpop.permute.xlu0 %358
      %362 = vset.pattern.permute.xlu0 0
      %363 = vperm.xlu0 %362, %v345
      %v364 = vpop.permute.xlu0 %363
      %v366 = vadd.f32 %v338, %v349
      %v367 = vadd.f32 %v339, %v354
      %v368 = vadd.f32 %v340, %v359
      %v369 = vadd.f32 %v341, %v364
      %v370 = vmax.f32 %v366, 0.0
      %v371 = vmax.f32 %v367, 0.0
      %v372 = vmax.f32 %v368, 0.0
      %v373 = vmax.f32 %v369, 0.0
      %v374 = vld [vmem:[%s3] sm:$0xff]
      %v375 = vld [vmem:[%s3 + $0x8] sm:$0xff]
      %v376 = vld [vmem:[%s3 + $0x10] sm:$0xff]
      %v377 = vld [vmem:[%s3 + $0x18] sm:$0xff]
      %v378 = vld [vmem:[%s4] sm:$0xff]
      %v379 = vld [vmem:[%s4 + $0x8] sm:$0xff]
      %v380 = vld [vmem:[%s4 + $0x10] sm:$0xff]
      %v381 = vld [vmem:[%s4 + $0x18] sm:$0xff]
      %383 = vset.pattern.permute.xlu0 0
      %384 = vperm.xlu0 %383, %v378
      %v385 = vpop.permute.xlu0 %384
      %388 = vset.pattern.permute.xlu0 0
      %389 = vperm.xlu0 %388, %v379
      %v390 = vpop.permute.xlu0 %389
      %393 = vset.pattern.permute.xlu0 0
      %394 = vperm.xlu0 %393, %v380
      %v395 = vpop.permute.xlu0 %394
      %398 = vset.pattern.permute.xlu0 0
      %399 = vperm.xlu0 %398, %v381
      %v400 = vpop.permute.xlu0 %399
      %vm402 = vcmask 261120
      %v404 = vsel %vm402, %v374, 0
      %v407 = vsel %vm402, %v375, 0
      %v410 = vsel %vm402, %v376, 0
      %v413 = vsel %vm402, %v377, 0
      %415 = vmatprep.subr.mxu0 0.0
      %416 = vmatpush1.msra.mxu0 0.0
      %417 = vmatprep.subr.mxu0 0.0
      %418 = vmatpush1.msra.mxu0 0.0
      %419 = vmatprep.subr.mxu0 0.0
      %420 = vmatpush1.msra.mxu0 0.0
      %421 = vmatprep.subr.mxu0 0.0
      %422 = vmatpush1.msra.mxu0 0.0
      %423 = vmatprep.subr.mxu0 0.0
      %424 = vmatpush1.msra.mxu0 0.0
      %425 = vmatprep.subr.mxu0 0.0
      %426 = vmatpush1.msra.mxu0 0.0
      %427 = vmatprep.subr.mxu0 0.0
      %428 = vmatpush1.msra.mxu0 0.0
      %429 = vmatprep.subr.mxu0 0.0
      %430 = vmatpush1.msra.mxu0 0.0
      %431 = vmatprep.subr.mxu0 0.0
      %432 = vmatpush1.msra.mxu0 0.0
      %433 = vmatprep.subr.mxu0 0.0
      %434 = vmatpush1.msra.mxu0 0.0
      %435 = vmatprep.subr.mxu0 0.0
      %436 = vmatpush1.msra.mxu0 0.0
      %437 = vmatprep.subr.mxu0 0.0
      %438 = vmatpush1.msra.mxu0 0.0
      %439 = vmatprep.subr.mxu0 0.0
      %440 = vmatpush1.msra.mxu0 %v373
      %441 = vmatprep.subr.mxu0 0.0
      %442 = vmatpush1.msra.mxu0 %v372
      %443 = vmatprep.subr.mxu0 0.0
      %444 = vmatpush1.msra.mxu0 %v371
      %445 = vmatprep.subr.mxu0 0.0
      %446 = vmatpush1.msra.mxu0 %v370
      %447 = vmatprep.subr.mxu0 0.0
      %448 = vmatpush2.msra.mxu0 0.0
      %449 = vmatprep.subr.mxu0 0.0
      %450 = vmatpush2.msra.mxu0 0.0
      %451 = vmatprep.subr.mxu0 0.0
      %452 = vmatpush2.msra.mxu0 0.0
      %453 = vmatprep.subr.mxu0 0.0
      %454 = vmatpush2.msra.mxu0 0.0
      %455 = vmatprep.subr.mxu0 0.0
      %456 = vmatpush2.msra.mxu0 0.0
      %457 = vmatprep.subr.mxu0 0.0
      %458 = vmatpush2.msra.mxu0 0.0
      %459 = vmatprep.subr.mxu0 0.0
      %460 = vmatpush2.msra.mxu0 0.0
      %461 = vmatprep.subr.mxu0 0.0
      %462 = vmatpush2.msra.mxu0 0.0
      %463 = vmatprep.subr.mxu0 0.0
      %464 = vmatpush2.msra.mxu0 0.0
      %465 = vmatprep.subr.mxu0 0.0
      %466 = vmatpush2.msra.mxu0 0.0
      %467 = vmatprep.subr.mxu0 0.0
      %468 = vmatpush2.msra.mxu0 0.0
      %469 = vmatprep.subr.mxu0 0.0
      %470 = vmatpush2.msra.mxu0 0.0
      %471 = vmatprep.subr.mxu0 0.0
      %472 = vmatpush2.msra.mxu0 0.0
      %473 = vmatprep.subr.mxu0 0.0
      %474 = vmatpush2.msra.mxu0 0.0
      %475 = vmatprep.subr.mxu0 0.0
      %476 = vmatpush2.msra.mxu0 0.0
      %477 = vmatprep.subr.mxu0 0.0
      %478 = vmatpush2.msra.mxu0 0.0
      %479 = vmatprep.mubr.f32.mxu0 0.0
      %480 = vmatmul.mubr.f32.gmra.mxu0 %v404
      %v481 = vpop.f32.mrf.mxu0
      %v482 = vadd.f32 %v385, %v481
      %v483 = vpop.f32.mrf.mxu0
      %484 = vmatprep.mubr.f32.mxu0 0.0
      %485 = vmatmul.mubr.f32.gmra.mxu0 %v407
      %v486 = vpop.f32.mrf.mxu0
      %v487 = vadd.f32 %v390, %v486
      %v488 = vpop.f32.mrf.mxu0
      %489 = vmatprep.mubr.f32.mxu0 0.0
      %490 = vmatmul.mubr.f32.gmra.mxu0 %v410
      %v491 = vpop.f32.mrf.mxu0
      %v492 = vadd.f32 %v395, %v491
      %v493 = vpop.f32.mrf.mxu0
      %494 = vmatprep.mubr.f32.mxu0 0.0
      %495 = vmatmul.mubr.f32.gmra.mxu0 %v413
      %v496 = vpop.f32.mrf.mxu0
      %v497 = vadd.f32 %v400, %v496
      %v498 = vpop.f32.mrf.mxu0
      %499 = vdwg.mxu0
      %500 = vst [vmem:[%s252] sm:$0xff] %v482
      %501 = vst [vmem:[%s252 + $0x8] sm:$0xff] %v487
      %502 = vst [vmem:[%s252 + $0x10] sm:$0xff] %v492
      %503 = vst [vmem:[%s252 + $0x18] sm:$0xff] %v497
      %p504 = scmp.lt.s32.totalorder %s20, 1
      %s505 = scalar_select %p504, %s20, 1
      %p506 = scmp.lt.s32.totalorder %s21, 0
      %s507 = scalar_select %p506, %s21, 0
      %s508 = smul.addr %s505, 4
      %s509 = sadd.s32 %s507, %s508
      %s510 = smul.addr %s509, 8
      %s511 = scalar_lea.vmem %s5, %s510
      // Predicated region
      $region41: #{tpu_custom_call.1} parent=39 // pred_check
        %p512 = pneg %p160
      $region42: #{tpu_custom_call.1} parent=39 // pred_check_branch
        %514 = sbr.rel (%p512) target = $region44
      $region43: #{tpu_custom_call.1} parent=39 // pred_region
        _
      $region44: #{tpu_custom_call.1} parent=39 // pred_fallthru
        _
    $region40: #{tpu_custom_call.1} parent=5 // pred_fallthru
      _
    %p515 = scmp.le.s32.totalorder 2, %s11
    // Predicated region
    $region45: #{tpu_custom_call.1} parent=5 // pred_check
      %p516 = pneg %p515
    $region46: #{tpu_custom_call.1} parent=5 // pred_check_branch
      %518 = sbr.rel (%p516) target = $region48
    $region47: #{tpu_custom_call.1} parent=5 // pred_region
      %s519 = ssub.s32 %s11, 2
      // Predicated region
      $region49: #{tpu_custom_call.1} parent=47 // pred_check
        %p520 = pneg %p166
      $region50: #{tpu_custom_call.1} parent=47 // pred_check_branch
        %522 = sbr.rel (%p520) target = $region52
      $region51: #{tpu_custom_call.1} parent=47 // pred_region
        %p523 = scmp.lt.s32.totalorder %s22, 1
        %s524 = scalar_select %p523, %s22, 1
        %p525 = scmp.lt.s32.totalorder %s23, 0
        %s526 = scalar_select %p525, %s23, 0
        %s527 = smul.addr %s524, 4
        %s528 = sadd.s32 %s526, %s527
        %s529 = smul.addr %s528, 8
        %s530 = scalar_lea.vmem %s5, %s529
      $region52: #{tpu_custom_call.1} parent=47 // pred_fallthru
        _
    $region48: #{tpu_custom_call.1} parent=5 // pred_fallthru
      _
  $region6: #{tpu_custom_call.1} parent=0 // loop_footer
    %s15 = sadd.s32 1, %s11
  $region7: #{tpu_custom_call.1} parent=0 // loop_footer_branch
    %10 = sbr.rel target = $region3
  $region8: #{tpu_custom_call.1} parent=0 // loop_exit
    _

</llo_original>
